<compile_context>
chip_gen: v5e
topology: v5e:2x2
jax: 0.10.0
libtpu: 0.0.40
codegen_flags: <defaults>
</compile_context>

<pallas_src>
import functools

import jax
import jax.numpy as jnp
from jax import lax
from jax.experimental import pallas as pl
from jax.experimental.pallas import tpu as pltpu


# -----------------------------------------------------------------------------
# Pallas kernel: pairwise relative-depth smooth-L1 loss -> scalar
# -----------------------------------------------------------------------------
def _rel_depth_loss_kernel(pred_ref, packed_ref, out_ref, *, bs):
    # packed_ref: (4*bs, nl) f32 slab, row groups =
    #   [median * depth_scale | mask | lm_x | lm_y], bs rows each.
    med = packed_ref[0 * bs:1 * bs, :]           # (bs, nl)
    msk = packed_ref[1 * bs:2 * bs, :]           # (bs, nl) in {0, 1}
    lmx = packed_ref[2 * bs:3 * bs, :]           # (bs, nl)
    lmy = packed_ref[3 * bs:4 * bs, :]           # (bs, nl)

    pred = pred_ref[...].astype(jnp.float32)     # (bs, nl, nl) — cast on load

    # rel_median[b,i,j] = median[b,i] - median[b,j]  (exactly 0 on the diagonal)
    rel_med = med[:, :, None] - med[:, None, :]

    # pairwise landmark distances ||lm_i - lm_j||
    dx = lmx[:, :, None] - lmx[:, None, :]
    dy = lmy[:, :, None] - lmy[:, None, :]
    dist = jnp.sqrt(dx * dx + dy * dy)

    # Exact division (no approx rcp) — see header note; target is exactly 0 on
    # the diagonal, so no diag mask is needed.
    target = rel_med / (dist + 1e-4)

    # crit = smooth_l1_loss(pred, target, reduce=False)   (beta = 1)
    d = pred - target
    ad = jnp.abs(d)
    crit = jnp.where(ad < 1.0, 0.5 * d * d, ad - 0.5)

    # numerator: fold the two 1-D masks directly into the multiply
    num = jnp.sum(crit * msk[:, :, None] * msk[:, None, :])

    # denominator without an (nl, nl) reduction: sum_b (sum_i msk[b,i])^2
    rs = jnp.sum(msk, axis=1, keepdims=True)     # (bs, 1)
    den = jnp.sum(rs * rs)

    out_ref[0] = num / (den + 1e-4)              # single scalar out, divide in-kernel


# -----------------------------------------------------------------------------
# custom_vjp wrapper: Pallas forward, cheap plain-JAX backward (pred only)
# -----------------------------------------------------------------------------
def _core_fwd(pred, packed):
    bs = pred.shape[0]
    loss = pl.pallas_call(
        functools.partial(_rel_depth_loss_kernel, bs=bs),
        out_shape=jax.ShapeDtypeStruct((1,), jnp.float32),
        in_specs=[
            pl.BlockSpec(memory_space=pltpu.MemorySpace.VMEM),   # pred (bs, nl, nl)
            pl.BlockSpec(memory_space=pltpu.MemorySpace.VMEM),   # packed (4*bs, nl)
        ],
        out_specs=pl.BlockSpec(memory_space=pltpu.MemorySpace.SMEM),
    )(pred, packed)[0]
    return loss, (pred, packed)


@jax.custom_vjp
def _rel_depth_loss_core(pred, packed):
    return _core_fwd(pred, packed)[0]


def _core_bwd(res, g):
    # Gradient only w.r.t. rel_depth_pred; median/mask/landmarks are no_grad in
    # the original module (packed gets zeros).
    pred, packed = res
    bs = pred.shape[0]
    med = packed[0 * bs:1 * bs]
    msk = packed[1 * bs:2 * bs]
    lmx = packed[2 * bs:3 * bs]
    lmy = packed[3 * bs:4 * bs]

    rel_med = med[:, :, None] - med[:, None, :]
    dx = lmx[:, :, None] - lmx[:, None, :]
    dy = lmy[:, :, None] - lmy[:, None, :]
    dist = jnp.sqrt(dx * dx + dy * dy)
    target = rel_med / (dist + 1e-4)             # same exact target as the forward
    rel_mask = msk[:, :, None] * msk[:, None, :]
    den = jnp.sum(rel_mask) + 1e-4

    d = pred.astype(jnp.float32) - target
    dpred = (g * rel_mask * jnp.clip(d, -1.0, 1.0) / den).astype(pred.dtype)
    return dpred, jnp.zeros_like(packed)


_rel_depth_loss_core.defvjp(_core_fwd, _core_bwd)


# -----------------------------------------------------------------------------
# Plain-JAX glue: extract_landmark_depth (grid_sample nearest + sort + median)
# TODO(synk): data-dependent gather (grid_sample) and per-landmark median-of-49
#             selection kept as plain JAX (no_grad path); run it under the same
#             jax.jit as the kernel so XLA fuses the whole chain.
# -----------------------------------------------------------------------------
def extract_landmark_depth_jax(depth, landmark, scale_factor, bbox, region_size=7):
    bs, _, H, W = depth.shape
    assert H == W
    img_size = W
    nl = landmark.shape[1]
    r2 = region_size * region_size

    # normalized landmark coords in [-1, 1]
    face_lm = (landmark - bbox[:, None, :2]) * scale_factor[:, None, :] / img_size * 2.0 - 1.0

    x = jnp.linspace(-region_size / 2.0, region_size / 2.0, region_size) / img_size * 2.0
    gx = jnp.broadcast_to(x[None, :], (region_size, region_size))      # varies along last dim
    gy = jnp.broadcast_to(x[:, None], (region_size, region_size))
    grid = jnp.stack([gx, gy], axis=2)                                  # (r, r, 2) = (x, y)
    grid = face_lm[:, :, None, None, :] + grid[None, None]              # (bs, nl, r, r, 2)
    grid = grid.reshape(bs, nl, r2, 2)

    # grid_sample, mode='nearest', padding_mode='zeros', align_corners=False
    gxc, gyc = grid[..., 0], grid[..., 1]
    ix = ((gxc + 1.0) * W - 1.0) / 2.0
    iy = ((gyc + 1.0) * H - 1.0) / 2.0
    ix_n = jnp.round(ix).astype(jnp.int32)
    iy_n = jnp.round(iy).astype(jnp.int32)
    in_bounds = (ix_n >= 0) & (ix_n < W) & (iy_n >= 0) & (iy_n < H)
    ix_c = jnp.clip(ix_n, 0, W - 1)
    iy_c = jnp.clip(iy_n, 0, H - 1)
    d2 = depth[:, 0]                                                    # (bs, H, W)
    b_idx = jnp.arange(bs)[:, None, None]
    samples = jnp.where(in_bounds, d2[b_idx, iy_c, ix_c], 0.0)          # (bs, nl, r2)

    s = jnp.sort(samples, axis=2)
    pos = s > 1e-4
    pos = pos.at[:, :, 0].set(False)          # mask[:, :, 0] = 0
    any_pos = jnp.any(pos, axis=2)
    first = jnp.argmax(pos, axis=2)           # first k >= 1 with sorted[k] > 1e-4
    st = jnp.where(any_pos, first, r2 - 1)    # fallback: last index
    median_ind = (st + r2 - 1) // 2
    median = jnp.take_along_axis(s, median_ind[..., None], axis=2)[..., 0]   # (bs, nl)
    median_mask = median > 1e-4
    return median, median_mask


# -----------------------------------------------------------------------------
# Public entry points
# -----------------------------------------------------------------------------
def rel_depth_loss_pallas(rel_depth_pred, median_scaled, median_mask, landmarks):
    """LossRelDepth core given precomputed (already depth_scale-d) medians/masks.

    Gradients flow only to rel_depth_pred (the rest is the PyTorch no_grad path).
    """
    lm = landmarks.astype(jnp.float32)
    packed = jnp.concatenate(
        [median_scaled.astype(jnp.float32),
         median_mask.astype(jnp.float32),
         lm[..., 0],
         lm[..., 1]],
        axis=0)                                   # (4*bs, nl) — one sublane-dense slab
    packed = lax.stop_gradient(packed)
    return _rel_depth_loss_core(rel_depth_pred, packed)


def loss_rel_depth(rel_depth_pred, depth, landmarks, scale_factor, bbox,
                   region_size=7, depth_scale=500.0):
    """Full LossRelDepth.forward. depth_scale is folded in here (matches module).

    Intended to be wrapped in jax.jit so the extract_landmark_depth glue fuses
    with the packing and the Pallas kernel into one dispatch chain.
    """
    median, median_mask = extract_landmark_depth_jax(
        depth, landmarks, scale_factor, bbox, region_size)
    return rel_depth_loss_pallas(
        rel_depth_pred, median * depth_scale, median_mask, landmarks)


# -----------------------------------------------------------------------------
# Pure-JAX reference of the pairwise loss (for verification)
# -----------------------------------------------------------------------------
def _reference_loss(rel_depth_pred, median, median_mask, landmarks):
    nl = rel_depth_pred.shape[1]
    mm = median_mask.astype(jnp.float32)
    rel_mask = mm[:, :, None] * mm[:, None, :]
    diag = 1.0 - jnp.eye(nl, dtype=jnp.float32)
    rel_med = median[:, :, None] - median[:, None, :]
    dist = jnp.linalg.norm(landmarks[:, :, None, :] - landmarks[:, None, :, :], axis=3)
    target = rel_med / (dist + 1e-4) * diag[None]
    d = rel_depth_pred - target
    ad = jnp.abs(d)
    crit = jnp.where(ad < 1.0, 0.5 * d * d, ad - 0.5)
    return jnp.sum(crit * rel_mask) / (jnp.sum(rel_mask) + 1e-4)


if __name__ == "__main__":
    # Small shapes consistent with the module (num_landmark=16, image_size=32,
    # landmark_region_size=7, depth_scale=500).
    bs, nl, img_size, region = 2, 16, 32, 7
    depth_scale = 500.0

    key = jax.random.PRNGKey(0)
    k1, k2, k3, k4 = jax.random.split(key, 4)

    u = jax.random.uniform(k1, (bs, 1, img_size, img_size), minval=0.05, maxval=1.0)
    holes = jax.random.uniform(k2, (bs, 1, img_size, img_size)) < 0.15
    depth = jnp.where(holes, 0.0, u).astype(jnp.float32)                # NCHW

    bbox = jnp.array([[2.0, 3.0, 30.0, 31.0],
                      [4.0, 1.0, 30.0, 29.0]], dtype=jnp.float32)       # (bs, 4)
    scale_factor = jnp.ones((bs, 1), dtype=jnp.float32)                 # (bs, 1)
    lm_off = jax.random.uniform(k3, (bs, nl, 2), minval=5.0, maxval=27.0)
    landmarks = bbox[:, None, :2] + lm_off                              # (bs, nl, 2)

    rel_depth_pred = jax.random.normal(k4, (bs, nl, nl), dtype=jnp.float32)

    # --- Forward: whole path (glue + Pallas kernel) under one jit ---
    loss_fn = jax.jit(loss_rel_depth)
    loss = loss_fn(rel_depth_pred, depth, landmarks, scale_factor, bbox)
    jax.block_until_ready(loss)

    # Reference (exact division in-kernel now -> tight tolerance)
    median, median_mask = extract_landmark_depth_jax(
        depth, landmarks, scale_factor, bbox, region)
    median_scaled = median * depth_scale
    ref = _reference_loss(rel_depth_pred, median_scaled, median_mask, landmarks)
    assert jnp.isfinite(loss), loss
    assert jnp.allclose(loss, ref, rtol=1e-4, atol=1e-5), (loss, ref)

    # --- Backward (custom_vjp) through the full jitted path ---
    grad_fn = jax.jit(jax.grad(loss_rel_depth, argnums=0))
    g = grad_fn(rel_depth_pred, depth, landmarks, scale_factor, bbox)
    jax.block_until_ready(g)
    g_ref = jax.grad(_reference_loss, argnums=0)(
        rel_depth_pred, median_scaled, median_mask, landmarks)
    assert jnp.all(jnp.isfinite(g))
    assert jnp.allclose(g, g_ref, rtol=1e-4, atol=1e-6), (g, g_ref)

    print("KERNEL_OK")
</pallas_src>

<mosaic_0001>
module attributes {stable_mosaic.version = 11 : i64} {
  func.func @_rel_depth_loss_kernel(%arg0: memref<2x16x16xf32, #tpu.memory_space<vmem>>, %arg1: memref<8x16xf32, #tpu.memory_space<vmem>>, %arg2: memref<1xf32, #tpu.memory_space<smem>>) attributes {dimension_semantics = [], scalar_prefetch = 0 : i64, scratch_operands = 0 : i64, tpu.core_type = #tpu.core_type<tc>} {
    %c0 = arith.constant 0 : index
    %c0_0 = arith.constant 0 : index
    %0 = vector.load %arg1[%c0, %c0_0] : memref<8x16xf32, #tpu.memory_space<vmem>>, vector<2x16xf32>
    %c2 = arith.constant 2 : index
    %c0_1 = arith.constant 0 : index
    %1 = vector.load %arg1[%c2, %c0_1] : memref<8x16xf32, #tpu.memory_space<vmem>>, vector<2x16xf32>
    %c4 = arith.constant 4 : index
    %c0_2 = arith.constant 0 : index
    %2 = vector.load %arg1[%c4, %c0_2] : memref<8x16xf32, #tpu.memory_space<vmem>>, vector<2x16xf32>
    %c6 = arith.constant 6 : index
    %c0_3 = arith.constant 0 : index
    %3 = vector.load %arg1[%c6, %c0_3] : memref<8x16xf32, #tpu.memory_space<vmem>>, vector<2x16xf32>
    %c0_4 = arith.constant 0 : index
    %c0_5 = arith.constant 0 : index
    %c0_6 = arith.constant 0 : index
    %4 = vector.load %arg0[%c0_4, %c0_5, %c0_6] : memref<2x16x16xf32, #tpu.memory_space<vmem>>, vector<2x16x16xf32>
    %5 = vector.shape_cast %0 : vector<2x16xf32> to vector<2x16x1xf32>
    %6 = vector.shape_cast %0 : vector<2x16xf32> to vector<2x1x16xf32>
    %7 = vector.broadcast %5 : vector<2x16x1xf32> to vector<2x16x16xf32>
    %8 = vector.broadcast %6 : vector<2x1x16xf32> to vector<2x16x16xf32>
    %9 = arith.subf %7, %8 : vector<2x16x16xf32>
    %10 = vector.shape_cast %2 : vector<2x16xf32> to vector<2x16x1xf32>
    %11 = vector.shape_cast %2 : vector<2x16xf32> to vector<2x1x16xf32>
    %12 = vector.broadcast %10 : vector<2x16x1xf32> to vector<2x16x16xf32>
    %13 = vector.broadcast %11 : vector<2x1x16xf32> to vector<2x16x16xf32>
    %14 = arith.subf %12, %13 : vector<2x16x16xf32>
    %15 = vector.shape_cast %3 : vector<2x16xf32> to vector<2x16x1xf32>
    %16 = vector.shape_cast %3 : vector<2x16xf32> to vector<2x1x16xf32>
    %17 = vector.broadcast %15 : vector<2x16x1xf32> to vector<2x16x16xf32>
    %18 = vector.broadcast %16 : vector<2x1x16xf32> to vector<2x16x16xf32>
    %19 = arith.subf %17, %18 : vector<2x16x16xf32>
    %20 = arith.mulf %14, %14 : vector<2x16x16xf32>
    %21 = arith.mulf %19, %19 : vector<2x16x16xf32>
    %22 = arith.addf %20, %21 : vector<2x16x16xf32>
    %23 = math.sqrt %22 : vector<2x16x16xf32>
    %cst = arith.constant 9.99999974E-5 : f32
    %24 = vector.broadcast %cst : f32 to vector<2x16x16xf32>
    %25 = arith.addf %23, %24 : vector<2x16x16xf32>
    %26 = arith.divf %9, %25 : vector<2x16x16xf32>
    %27 = arith.subf %4, %26 : vector<2x16x16xf32>
    %28 = math.absf %27 : vector<2x16x16xf32>
    %cst_7 = arith.constant 1.000000e+00 : f32
    %29 = vector.broadcast %cst_7 : f32 to vector<2x16x16xf32>
    %30 = arith.cmpf olt, %28, %29 : vector<2x16x16xf32>
    %cst_8 = arith.constant 5.000000e-01 : f32
    %31 = vector.broadcast %cst_8 : f32 to vector<2x16x16xf32>
    %32 = arith.mulf %31, %27 : vector<2x16x16xf32>
    %33 = arith.mulf %32, %27 : vector<2x16x16xf32>
    %cst_9 = arith.constant 5.000000e-01 : f32
    %34 = vector.broadcast %cst_9 : f32 to vector<2x16x16xf32>
    %35 = arith.subf %28, %34 : vector<2x16x16xf32>
    %36 = arith.select %30, %33, %35 : vector<2x16x16xi1>, vector<2x16x16xf32>
    %37 = vector.shape_cast %1 : vector<2x16xf32> to vector<2x16x1xf32>
    %38 = vector.broadcast %37 : vector<2x16x1xf32> to vector<2x16x16xf32>
    %39 = arith.mulf %36, %38 : vector<2x16x16xf32>
    %40 = vector.shape_cast %1 : vector<2x16xf32> to vector<2x1x16xf32>
    %41 = vector.broadcast %40 : vector<2x1x16xf32> to vector<2x16x16xf32>
    %42 = arith.mulf %39, %41 : vector<2x16x16xf32>
    %43 = vector.shape_cast %42 : vector<2x16x16xf32> to vector<1x2x16x16xf32>
    %cst_10 = arith.constant dense<0.000000e+00> : vector<1xf32>
    %44 = vector.multi_reduction <add>, %43, %cst_10 [1, 2, 3] : vector<1x2x16x16xf32> to vector<1xf32>
    %45 = vector.shape_cast %44 : vector<1xf32> to vector<1x1x1x1xf32>
    %46 = vector.extract %45[0, 0, 0, 0] : f32 from vector<1x1x1x1xf32>
    %cst_11 = arith.constant dense<0.000000e+00> : vector<2xf32>
    %47 = vector.multi_reduction <add>, %1, %cst_11 [1] : vector<2x16xf32> to vector<2xf32>
    %48 = vector.shape_cast %47 : vector<2xf32> to vector<2x1xf32>
    %49 = arith.mulf %48, %48 : vector<2x1xf32>
    %50 = vector.shape_cast %49 : vector<2x1xf32> to vector<1x2x1xf32>
    %cst_12 = arith.constant dense<0.000000e+00> : vector<1xf32>
    %51 = vector.multi_reduction <add>, %50, %cst_12 [1, 2] : vector<1x2x1xf32> to vector<1xf32>
    %52 = vector.shape_cast %51 : vector<1xf32> to vector<1x1x1xf32>
    %53 = vector.extract %52[0, 0, 0] : f32 from vector<1x1x1xf32>
    %cst_13 = arith.constant 9.99999974E-5 : f32
    %54 = arith.addf %53, %cst_13 : f32
    %55 = arith.divf %46, %54 : f32
    %c0_14 = arith.constant 0 : index
    %56 = memref.load %arg2[%c0_14] : memref<1xf32, #tpu.memory_space<smem>>
    memref.store %55, %arg2[%c0_14] : memref<1xf32, #tpu.memory_space<smem>>
    return
  }
}

</mosaic_0001>

<llo_original>
// kernel: loss_rel_depth.1
$region0: #{loss_rel_depth.1}
  #allocation0 [shape = 'u32[]', space=smem, size = 0x4, offset = 0x4, fixed_abs, tag = 'smem constant byte address 0x4 - core index']
  #allocation1 [shape = 'u32[72,128]{1,0:T(1,128)}', space=vmem, size = 0x9000, scoped, tag = 'internal scratch']
  %s0 = inlined_call_operand.vmem [shape: f32[2,16,16], index: 0, kind: input, shape index: {}]
  %s1 = inlined_call_operand.vmem [shape: f32[8,16], index: 1, kind: input, shape index: {}]
  %s2 = inlined_call_operand.hbm [shape: f32[1], index: 2, kind: output, shape index: {}]
  %s3 = sld [smem:[#allocation0]]
  $region18: #{loss_rel_depth.1} parent=0
    _
  %s5 = ssub.s32 1, %s3
  %s6 = scalar_select 0, %s5, %s3
  $region1: #{loss_rel_depth.1} parent=0
    #allocation2 [shape = 'u8[512]{0}', space=smem, size = 0x200, scoped, tag = 'output window, operand 0, single buffered']
    #allocation3 [shape = 's32[1]{0}', space=sflag, size = 0x4, scoped, tag = 'scoped memory for loss_rel_depth.1']
    %7 = vsyncpa [#allocation3], 0
    // Predicated region
    $region2: #{loss_rel_depth.1} parent=1 // pred_check
      _
    $region3: #{loss_rel_depth.1} parent=1 // pred_check_branch
      %9 = sbr.rel (0) target = $region5
    $region4: #{loss_rel_depth.1} parent=1 // pred_region
      _
    $region5: #{loss_rel_depth.1} parent=1 // pred_fallthru
      _
    // Predicated region
    $region6: #{loss_rel_depth.1} parent=1 // pred_check
      _
    $region7: #{loss_rel_depth.1} parent=1 // pred_check_branch
      %11 = sbr.rel (0) target = $region9
    $region8: #{loss_rel_depth.1} parent=1 // pred_region
      _
    $region9: #{loss_rel_depth.1} parent=1 // pred_fallthru
      _
    %v12 = vld [vmem:[%s1] sm:$0x3]
    %v13 = vld [vmem:[%s1 + $0x2] sm:$0x3]
    %v14 = vld [vmem:[%s1 + $0x4] sm:$0x3]
    %v15 = vld [vmem:[%s1 + $0x6] sm:$0x3]
    %v16 = vld [vmem:[%s0] sm:$0xff]
    %v17 = vld [vmem:[%s0 + $0x8] sm:$0xff]
    %v18 = vld [vmem:[%s0 + $0x10] sm:$0xff]
    %v19 = vld [vmem:[%s0 + $0x18] sm:$0xff]
    %v20 = vperm.slane %v12, 0
    %v21 = vlaneseq
    %v22 = vshrl.u32 %v21, 7
    %24 = vset.pattern.permute.xlu0 %v22
    %25 = vperm.xlu0 %24, %v20
    %v26 = vpop.permute.xlu0 %25
    %v27 = vlaneseq
    %v28 = vshrl.u32 %v27, 7
    %v29 = vadd.s32 %v28, 8
    %30 = vset.pattern.permute.xlu0 %v29
    %31 = vperm.xlu0 %30, %v20
    %v32 = vpop.permute.xlu0 %31
    %v33 = vperm.slane %v12, 1
    %v34 = vlaneseq
    %v35 = vshrl.u32 %v34, 7
    %37 = vset.pattern.permute.xlu0 %v35
    %38 = vperm.xlu0 %37, %v33
    %v39 = vpop.permute.xlu0 %38
    %v40 = vlaneseq
    %v41 = vshrl.u32 %v40, 7
    %v42 = vadd.s32 %v41, 8
    %43 = vset.pattern.permute.xlu0 %v42
    %44 = vperm.xlu0 %43, %v33
    %v45 = vpop.permute.xlu0 %44
    %v47 = vrot.slane %v12, 1
    %v48 = vperm.slane %v12, 0
    %v49 = vperm.slane %v47, 0
    %v52 = vsub.f32 %v26, %v48
    %v53 = vsub.f32 %v32, %v48
    %v54 = vsub.f32 %v39, %v49
    %v55 = vsub.f32 %v45, %v49
    %v56 = vperm.slane %v14, 0
    %v57 = vlaneseq
    %v58 = vshrl.u32 %v57, 7
    %60 = vset.pattern.permute.xlu0 %v58
    %61 = vperm.xlu0 %60, %v56
    %v62 = vpop.permute.xlu0 %61
    %v63 = vlaneseq
    %v64 = vshrl.u32 %v63, 7
    %v65 = vadd.s32 %v64, 8
    %66 = vset.pattern.permute.xlu0 %v65
    %67 = vperm.xlu0 %66, %v56
    %v68 = vpop.permute.xlu0 %67
    %v69 = vperm.slane %v14, 1
    %v70 = vlaneseq
    %v71 = vshrl.u32 %v70, 7
    %73 = vset.pattern.permute.xlu0 %v71
    %74 = vperm.xlu0 %73, %v69
    %v75 = vpop.permute.xlu0 %74
    %v76 = vlaneseq
    %v77 = vshrl.u32 %v76, 7
    %v78 = vadd.s32 %v77, 8
    %79 = vset.pattern.permute.xlu0 %v78
    %80 = vperm.xlu0 %79, %v69
    %v81 = vpop.permute.xlu0 %80
    %v83 = vrot.slane %v14, 1
    %v84 = vperm.slane %v14, 0
    %v85 = vperm.slane %v83, 0
    %v88 = vsub.f32 %v62, %v84
    %v89 = vsub.f32 %v68, %v84
    %v90 = vsub.f32 %v75, %v85
    %v91 = vsub.f32 %v81, %v85
    %v92 = vperm.slane %v15, 0
    %v93 = vlaneseq
    %v94 = vshrl.u32 %v93, 7
    %96 = vset.pattern.permute.xlu0 %v94
    %97 = vperm.xlu0 %96, %v92
    %v98 = vpop.permute.xlu0 %97
    %v99 = vlaneseq
    %v100 = vshrl.u32 %v99, 7
    %v101 = vadd.s32 %v100, 8
    %102 = vset.pattern.permute.xlu0 %v101
    %103 = vperm.xlu0 %102, %v92
    %v104 = vpop.permute.xlu0 %103
    %v105 = vperm.slane %v15, 1
    %v106 = vlaneseq
    %v107 = vshrl.u32 %v106, 7
    %109 = vset.pattern.permute.xlu0 %v107
    %110 = vperm.xlu0 %109, %v105
    %v111 = vpop.permute.xlu0 %110
    %v112 = vlaneseq
    %v113 = vshrl.u32 %v112, 7
    %v114 = vadd.s32 %v113, 8
    %115 = vset.pattern.permute.xlu0 %v114
    %116 = vperm.xlu0 %115, %v105
    %v117 = vpop.permute.xlu0 %116
    %v119 = vrot.slane %v15, 1
    %v120 = vperm.slane %v15, 0
    %v121 = vperm.slane %v119, 0
    %v124 = vsub.f32 %v98, %v120
    %v125 = vsub.f32 %v104, %v120
    %v126 = vsub.f32 %v111, %v121
    %v127 = vsub.f32 %v117, %v121
    %v128 = vmul.f32 %v88, %v88
    %v129 = vmul.f32 %v89, %v89
    %v130 = vmul.f32 %v90, %v90
    %v131 = vmul.f32 %v91, %v91
    %v132 = vmul.f32 %v124, %v124
    %v133 = vmul.f32 %v125, %v125
    %v134 = vmul.f32 %v126, %v126
    %v135 = vmul.f32 %v127, %v127
    %v136 = vadd.f32 %v128, %v132
    %v137 = vadd.f32 %v129, %v133
    %v138 = vadd.f32 %v130, %v134
    %v139 = vadd.f32 %v131, %v135
    %v140 = vrsqrt.pop %v136
    %v141 = vmul.f32 %v140, %v136
    %v142 = vmul.f32 %v141, %v140
    %v143 = vmul.f32 0.5, %v142
    %v144 = vsub.f32 1.5, %v143
    %v145 = vmul.f32 %v140, %v144
    %v146 = vmul.f32 %v136, %v145
    %vm147 = vcmp.eq.f32.partialorder %v136, inf
    %v148 = vsel %vm147, %v136, %v146
    %vm149 = vcmp.eq.f32.partialorder %v136, 0.0
    %v150 = vand.u32 %v136, 2147483648
    %v151 = vsel %vm149, %v150, %v148
    %v152 = vrsqrt.pop %v137
    %v153 = vmul.f32 %v152, %v137
    %v154 = vmul.f32 %v153, %v152
    %v155 = vmul.f32 0.5, %v154
    %v156 = vsub.f32 1.5, %v155
    %v157 = vmul.f32 %v152, %v156
    %v158 = vmul.f32 %v137, %v157
    %vm159 = vcmp.eq.f32.partialorder %v137, inf
    %v160 = vsel %vm159, %v137, %v158
    %vm161 = vcmp.eq.f32.partialorder %v137, 0.0
    %v162 = vand.u32 %v137, 2147483648
    %v163 = vsel %vm161, %v162, %v160
    %v164 = vrsqrt.pop %v138
    %v165 = vmul.f32 %v164, %v138
    %v166 = vmul.f32 %v165, %v164
    %v167 = vmul.f32 0.5, %v166
    %v168 = vsub.f32 1.5, %v167
    %v169 = vmul.f32 %v164, %v168
    %v170 = vmul.f32 %v138, %v169
    %vm171 = vcmp.eq.f32.partialorder %v138, inf
    %v172 = vsel %vm171, %v138, %v170
    %vm173 = vcmp.eq.f32.partialorder %v138, 0.0
    %v174 = vand.u32 %v138, 2147483648
    %v175 = vsel %vm173, %v174, %v172
    %v176 = vrsqrt.pop %v139
    %v177 = vmul.f32 %v176, %v139
    %v178 = vmul.f32 %v177, %v176
    %v179 = vmul.f32 0.5, %v178
    %v180 = vsub.f32 1.5, %v179
    %v181 = vmul.f32 %v176, %v180
    %v182 = vmul.f32 %v139, %v181
    %vm183 = vcmp.eq.f32.partialorder %v139, inf
    %v184 = vsel %vm183, %v139, %v182
    %vm185 = vcmp.eq.f32.partialorder %v139, 0.0
    %v186 = vand.u32 %v139, 2147483648
    %v187 = vsel %vm185, %v186, %v184
    %v188 = vadd.f32 %v151, 0.0001
    %v189 = vadd.f32 %v163, 0.0001
    %v190 = vadd.f32 %v175, 0.0001
    %v191 = vadd.f32 %v187, 0.0001
    %v192 = vrcp.pop %v188
    %v193 = vmul.f32 %v188, %v192
    %v194 = vsub.f32 1.0, %v193
    %v195 = vmul.f32 %v192, %v194
    %v196 = vadd.f32 %v192, %v195
    %vm197 = vweird.f32 %v188
    %vm198 = vweird.f32 %v192
    %vm199 = vmor %vm197, %vm198
    %v200 = vsel %vm199, %v192, %v196
    %v201 = vand.u32 2147483647, %v188
    %vm202 = vcmp.eq.f32.partialorder %v201, 8.507059e+37
    %v203 = vand.u32 %v188, 2147483648
    %v204 = vor.u32 1.1754944e-38, %v203
    %v205 = vsel %vm202, %v204, %v200
    %v206 = vmul.f32 %v52, %v205
    %v207 = vrcp.pop %v189
    %v208 = vmul.f32 %v189, %v207
    %v209 = vsub.f32 1.0, %v208
    %v210 = vmul.f32 %v207, %v209
    %v211 = vadd.f32 %v207, %v210
    %vm212 = vweird.f32 %v189
    %vm213 = vweird.f32 %v207
    %vm214 = vmor %vm212, %vm213
    %v215 = vsel %vm214, %v207, %v211
    %v216 = vand.u32 2147483647, %v189
    %vm217 = vcmp.eq.f32.partialorder %v216, 8.507059e+37
    %v218 = vand.u32 %v189, 2147483648
    %v219 = vor.u32 1.1754944e-38, %v218
    %v220 = vsel %vm217, %v219, %v215
    %v221 = vmul.f32 %v53, %v220
    %v222 = vrcp.pop %v190
    %v223 = vmul.f32 %v190, %v222
    %v224 = vsub.f32 1.0, %v223
    %v225 = vmul.f32 %v222, %v224
    %v226 = vadd.f32 %v222, %v225
    %vm227 = vweird.f32 %v190
    %vm228 = vweird.f32 %v222
    %vm229 = vmor %vm227, %vm228
    %v230 = vsel %vm229, %v222, %v226
    %v231 = vand.u32 2147483647, %v190
    %vm232 = vcmp.eq.f32.partialorder %v231, 8.507059e+37
    %v233 = vand.u32 %v190, 2147483648
    %v234 = vor.u32 1.1754944e-38, %v233
    %v235 = vsel %vm232, %v234, %v230
    %v236 = vmul.f32 %v54, %v235
    %v237 = vrcp.pop %v191
    %v238 = vmul.f32 %v191, %v237
    %v239 = vsub.f32 1.0, %v238
    %v240 = vmul.f32 %v237, %v239
    %v241 = vadd.f32 %v237, %v240
    %vm242 = vweird.f32 %v191
    %vm243 = vweird.f32 %v237
    %vm244 = vmor %vm242, %vm243
    %v245 = vsel %vm244, %v237, %v241
    %v246 = vand.u32 2147483647, %v191
    %vm247 = vcmp.eq.f32.partialorder %v246, 8.507059e+37
    %v248 = vand.u32 %v191, 2147483648
    %v249 = vor.u32 1.1754944e-38, %v248
    %v250 = vsel %vm247, %v249, %v245
    %v251 = vmul.f32 %v55, %v250
    %v252 = vsub.f32 %v16, %v206
    %v253 = vsub.f32 %v17, %v221
    %v254 = vsub.f32 %v18, %v236
    %v255 = vsub.f32 %v19, %v251
    %v256 = vand.u32 2147483647, %v252
    %v257 = vand.u32 2147483647, %v253
    %v258 = vand.u32 2147483647, %v254
    %v259 = vand.u32 2147483647, %v255
    %vm260 = vcmp.lt.f32.partialorder %v256, 1.0
    %vm261 = vcmp.lt.f32.partialorder %v257, 1.0
    %vm262 = vcmp.lt.f32.partialorder %v258, 1.0
    %vm263 = vcmp.lt.f32.partialorder %v259, 1.0
    %v264 = vmul.f32 %v252, 0.5
    %v265 = vmul.f32 %v253, 0.5
    %v266 = vmul.f32 %v254, 0.5
    %v267 = vmul.f32 %v255, 0.5
    %v268 = vmul.f32 %v264, %v252
    %v269 = vmul.f32 %v265, %v253
    %v270 = vmul.f32 %v266, %v254
    %v271 = vmul.f32 %v267, %v255
    %v272 = vsub.f32 %v256, 0.5
    %v273 = vsub.f32 %v257, 0.5
    %v274 = vsub.f32 %v258, 0.5
    %v275 = vsub.f32 %v259, 0.5
    %v276 = vsel %vm260, %v268, %v272
    %v277 = vsel %vm261, %v269, %v273
    %v278 = vsel %vm262, %v270, %v274
    %v279 = vsel %vm263, %v271, %v275
    %v280 = vperm.slane %v13, 0
    %v281 = vlaneseq
    %v282 = vshrl.u32 %v281, 7
    %284 = vset.pattern.permute.xlu0 %v282
    %285 = vperm.xlu0 %284, %v280
    %v286 = vpop.permute.xlu0 %285
    %v287 = vlaneseq
    %v288 = vshrl.u32 %v287, 7
    %v289 = vadd.s32 %v288, 8
    %290 = vset.pattern.permute.xlu0 %v289
    %291 = vperm.xlu0 %290, %v280
    %v292 = vpop.permute.xlu0 %291
    %v293 = vperm.slane %v13, 1
    %v294 = vlaneseq
    %v295 = vshrl.u32 %v294, 7
    %297 = vset.pattern.permute.xlu0 %v295
    %298 = vperm.xlu0 %297, %v293
    %v299 = vpop.permute.xlu0 %298
    %v300 = vlaneseq
    %v301 = vshrl.u32 %v300, 7
    %v302 = vadd.s32 %v301, 8
    %303 = vset.pattern.permute.xlu0 %v302
    %304 = vperm.xlu0 %303, %v293
    %v305 = vpop.permute.xlu0 %304
    %v306 = vmul.f32 %v276, %v286
    %v307 = vmul.f32 %v277, %v292
    %v308 = vmul.f32 %v278, %v299
    %v309 = vmul.f32 %v279, %v305
    %v311 = vrot.slane %v13, 1
    %v312 = vperm.slane %v13, 0
    %v313 = vperm.slane %v311, 0
    %v316 = vmul.f32 %v306, %v312
    %v317 = vmul.f32 %v307, %v312
    %v318 = vmul.f32 %v308, %v313
    %v319 = vmul.f32 %v309, %v313
    %vm320 = vcmask 130048
    %v321 = vsel %vm320, %v316, 0.0
    %v322 = vsel %vm320, %v317, 0.0
    %v323 = vadd.f32 %v321, %v322
    %v324 = vsel %vm320, %v318, 0.0
    %v325 = vadd.f32 %v323, %v324
    %v326 = vsel %vm320, %v319, 0.0
    %v327 = vadd.f32 %v325, %v326
    %328 = vadd.xlane.f32.xlu0 %v327
    %v329 = vpop.xlane.xlu0 %328
    %v330 = vrot.slane %v329, 4
    %v331 = vadd.f32 %v329, %v330
    %v332 = vrot.slane %v331, 2
    %v333 = vadd.f32 %v331, %v332
    %v334 = vrot.slane %v333, 1
    %v335 = vadd.f32 %v333, %v334
    %s336 = vtos %v335
    %vm337 = vcmask 123904
    %v338 = vsel %vm337, %v13, 0.0
    %339 = vadd.xlane.f32.xlu0 %v338
    %v340 = vpop.xlane.xlu0 %339
    %v341 = vmul.f32 %v340, %v340
    %vm342 = vcmask 1024
    %v343 = vsel %vm342, %v341, 0.0
    %344 = vadd.xlane.f32.xlu0 %v343
    %v345 = vpop.xlane.xlu0 %344
    %v346 = vrot.slane %v345, 4
    %v347 = vadd.f32 %v345, %v346
    %v348 = vrot.slane %v347, 2
    %v349 = vadd.f32 %v347, %v348
    %v350 = vrot.slane %v349, 1
    %v351 = vadd.f32 %v349, %v350
    %s352 = vtos %v351
    %s353 = sadd.f32 %s352, 0.0001
    %v354 = vstv %s353
    %v355 = vrcp.pop %v354
    %v356 = vmul.f32 %v354, %v355
    %v357 = vsub.f32 1.0, %v356
    %v358 = vmul.f32 %v355, %v357
    %v359 = vadd.f32 %v355, %v358
    %vm360 = vweird.f32 %v354
    %vm361 = vweird.f32 %v355
    %vm362 = vmor %vm360, %vm361
    %v363 = vsel %vm362, %v355, %v359
    %v364 = vand.u32 2147483647, %v354
    %vm365 = vcmp.eq.f32.partialorder %v364, 8.507059e+37
    %v366 = vand.u32 %v354, 2147483648
    %v367 = vor.u32 1.1754944e-38, %v366
    %v368 = vsel %vm365, %v367, %v363
    %s369 = vtos %v368
    %s370 = smul.f32 %s336, %s369
    %s371 = scalar_lea.smem [#allocation2], 0
    %372 = sst [smem:[%s371]] %s370
    // Predicated region
    $region10: #{loss_rel_depth.1} parent=1 // pred_check
      _
    $region11: #{loss_rel_depth.1} parent=1 // pred_check_branch
      %374 = sbr.rel (0) target = $region13
    $region12: #{loss_rel_depth.1} parent=1 // pred_region
      %376 = vsyncadd [#allocation3], 0
      %s378 = sshll.u32 %s2, 4
      %s379 = int_to_ptr.hbm [resolvable:$true] %s378
      %381 = dma.smem_to_hbm [#allocation2], 16, %s379, [#allocation3]
    $region13: #{loss_rel_depth.1} parent=1 // pred_fallthru
      _
    // Predicated region
    $region14: #{loss_rel_depth.1} parent=1 // pred_check
      _
    $region15: #{loss_rel_depth.1} parent=1 // pred_check_branch
      %383 = sbr.rel (0) target = $region17
    $region16: #{loss_rel_depth.1} parent=1 // pred_region
      %385 = dma.done [#allocation3], 16
    $region17: #{loss_rel_depth.1} parent=1 // pred_fallthru
      _
    %386 = sfence
    %387 = vsyncpa [#allocation3], 1

</llo_original>
